<compile_context>
chip_gen: v5e
topology: v5e:2x2
jax: 0.10.0
libtpu: 0.0.40
codegen_flags: <defaults>
</compile_context>

<pallas_src>
import functools

import jax
import jax.numpy as jnp
from jax.experimental import pallas as pl
from jax.experimental.pallas import tpu as pltpu


def _mlp_kernel(x_ref, w1_ref, b1_ref, w2_ref, b2_ref, w3_ref, b3_ref, o_ref):
    # x_ref: (3, tile_b) -- activations are (features, batch); batch on lanes.
    x = x_ref[...]                                               # (3, tile_b)

    # layer 1: (16,3) @ (3,tile_b) + b1 -> relu   (f32 accumulation on MXU)
    h1 = jnp.dot(w1_ref[...], x, preferred_element_type=jnp.float32)
    h1 = jnp.maximum(h1 + b1_ref[...], 0.0)                      # (16, tile_b)

    # layer 2: (8,16) @ (16,tile_b) + b2 -> relu
    h2 = jnp.dot(w2_ref[...], h1, preferred_element_type=jnp.float32)
    h2 = jnp.maximum(h2 + b2_ref[...], 0.0)                      # (8, tile_b)

    # layer 3: output width 1 -> skip the 1-row MXU matmul; VPU broadcast
    # multiply then sublane (XLU) reduction. Store stays lane-dense.
    out = jnp.sum(w3_ref[...] * h2, axis=0, keepdims=True) + b3_ref[...]
    o_ref[...] = out.astype(o_ref.dtype)                         # (1, tile_b)


_LANE = 128
_MAX_TILE_B = 65536      # ~20 MiB VMEM footprint; safe on v5e / v6e / v7x
_MIN_GRID_STEPS = 4      # keep several steps so v7x megacore can shard them


def _pick_tile(batch, requested_tile):
    """Lane-dense batch tile: multiple of 128, VMEM-capped, re-balanced so the
    grid keeps >= _MIN_GRID_STEPS steps (when the batch allows) with minimal
    tail padding."""
    b_pad128 = pl.cdiv(batch, _LANE) * _LANE
    tile = max(_LANE, (min(requested_tile, _MAX_TILE_B) // _LANE) * _LANE)
    steps_tile = max(_LANE, (b_pad128 // _MIN_GRID_STEPS // _LANE) * _LANE)
    tile = min(tile, steps_tile, b_pad128)
    num_steps = pl.cdiv(b_pad128, tile)
    tile = pl.cdiv(b_pad128 // _LANE, num_steps) * _LANE   # re-balance (<= tile)
    return tile, num_steps * tile


@functools.partial(
    jax.jit, static_argnames=("tile_b", "use_bf16", "x_feature_major"))
def lightnet_forward(x, params, *, tile_b=32768, use_bf16=False,
                     x_feature_major=False):
    """LightNet forward.

    x: (B, 3) float32, or (3, B) if x_feature_major=True (no transpose pass).
    params: PyTorch nn.Linear layout, w: (out_features, in_features), b: (out,).
    Returns (B, 1) float32.
    """
    if x_feature_major:
        f_in, B = x.shape
    else:
        B, f_in = x.shape
    assert f_in == 3

    tile, b_pad = _pick_tile(B, tile_b)
    in_dtype = jnp.bfloat16 if use_bf16 else jnp.float32

    # Layout plumbing — fused under jit into a single copy (or skipped entirely
    # when the producer already emits feature-major data).
    if x_feature_major:
        x_t = jnp.pad(x, ((0, 0), (0, b_pad - B)))
    else:
        x_t = jnp.pad(x, ((0, b_pad - B), (0, 0))).T              # (3, b_pad)
    x_t = x_t.astype(in_dtype)

    w1 = params["w1"].astype(in_dtype)                            # (16, 3)
    b1 = params["b1"].reshape(16, 1).astype(jnp.float32)
    w2 = params["w2"].astype(in_dtype)                            # (8, 16)
    b2 = params["b2"].reshape(8, 1).astype(jnp.float32)
    w3_t = params["w3"].reshape(1, 8).T.astype(jnp.float32)       # (8, 1)
    b3 = params["b3"].reshape(1, 1).astype(jnp.float32)

    grid = (b_pad // tile,)

    # Scoped-VMEM: ~352 B/lane (sublane-padded x/out double-buffers + f32
    # temps) plus slack; raise above v5e's 16 MiB default, stay under v7x's
    # 64 MiB physical VMEM.
    est_vmem = 352 * tile + (2 << 20)
    vmem_limit = int(min(max(est_vmem, 32 << 20), 56 << 20))

    out_t = pl.pallas_call(
        _mlp_kernel,
        out_shape=jax.ShapeDtypeStruct((1, b_pad), jnp.float32),
        grid_spec=pltpu.PrefetchScalarGridSpec(
            num_scalar_prefetch=0,
            grid=grid,
            in_specs=[
                pl.BlockSpec((3, tile), lambda i: (0, i)),   # x (lane-dense)
                pl.BlockSpec((16, 3), lambda i: (0, 0)),     # w1 (VMEM-resident)
                pl.BlockSpec((16, 1), lambda i: (0, 0)),     # b1
                pl.BlockSpec((8, 16), lambda i: (0, 0)),     # w2
                pl.BlockSpec((8, 1), lambda i: (0, 0)),      # b2
                pl.BlockSpec((8, 1), lambda i: (0, 0)),      # w3 as (8,1)
                pl.BlockSpec((1, 1), lambda i: (0, 0)),      # b3
            ],
            out_specs=pl.BlockSpec((1, tile), lambda i: (0, i)),
        ),
        compiler_params=pltpu.CompilerParams(
            dimension_semantics=("parallel",),   # megacore-shardable on v7x
            vmem_limit_bytes=vmem_limit,
        ),
    )(x_t, w1, b1, w2, b2, w3_t, b3)

    return out_t[:, :B].T                                         # (B, 1)


def init_params(key):
    """Deterministic synthetic init, PyTorch nn.Linear layout (w: (out, in))."""
    k1, k2, k3, k4, k5, k6 = jax.random.split(key, 6)
    w1 = jax.random.normal(k1, (16, 3), jnp.float32) * 0.5
    b1 = jax.random.normal(k2, (16,), jnp.float32) * 0.1
    w2 = jax.random.normal(k3, (8, 16), jnp.float32) * 0.5
    b2 = jax.random.normal(k4, (8,), jnp.float32) * 0.1
    w3 = jax.random.normal(k5, (1, 8), jnp.float32) * 0.5
    b3 = jax.random.normal(k6, (1,), jnp.float32) * 0.1
    return dict(w1=w1, b1=b1, w2=w2, b2=b2, w3=w3, b3=b3)


def _reference_forward(x, p):
    h1 = jnp.maximum(x @ p["w1"].T + p["b1"], 0.0)
    h2 = jnp.maximum(h1 @ p["w2"].T + p["b2"], 0.0)
    return h2 @ p["w3"].T + p["b3"]


if __name__ == "__main__":
    key = jax.random.PRNGKey(0)
    kx, kp = jax.random.split(key)
    params = init_params(kp)

    # Small shapes: single-tile path (B=16) and multi-step grid + tail-padding
    # path (B=300 -> 3 grid steps of 128 lanes).
    for B in (16, 300):
        xb = jax.random.normal(jax.random.fold_in(kx, B), (B, 3), jnp.float32)
        out = jax.block_until_ready(lightnet_forward(xb, params))
        ref = _reference_forward(xb, params)
        assert out.shape == (B, 1)
        assert jnp.allclose(out, ref, atol=1e-4, rtol=1e-4), (
            float(jnp.max(jnp.abs(out - ref))))

    # Feature-major producer path (review option (a): no transpose pass).
    B = 16
    xb = jax.random.normal(jax.random.fold_in(kx, B), (B, 3), jnp.float32)
    out_fm = jax.block_until_ready(
        lightnet_forward(xb.T, params, x_feature_major=True))
    assert jnp.allclose(out_fm, _reference_forward(xb, params),
                        atol=1e-4, rtol=1e-4)

    print("KERNEL_OK")
</pallas_src>

<mosaic_0001>
module attributes {stable_mosaic.version = 11 : i64} {
  func.func @_mlp_kernel(%arg0: i32, %arg1: memref<3x128xf32, #tpu.memory_space<vmem>>, %arg2: memref<16x3xf32, #tpu.memory_space<vmem>>, %arg3: memref<16x1xf32, #tpu.memory_space<vmem>>, %arg4: memref<8x16xf32, #tpu.memory_space<vmem>>, %arg5: memref<8x1xf32, #tpu.memory_space<vmem>>, %arg6: memref<8x1xf32, #tpu.memory_space<vmem>>, %arg7: memref<1x1xf32, #tpu.memory_space<vmem>>, %arg8: memref<1x128xf32, #tpu.memory_space<vmem>>) attributes {dimension_semantics = [#tpu.dimension_semantics<parallel>], iteration_bounds = array<i64: 1>, scalar_prefetch = 0 : i64, scratch_operands = 0 : i64, tpu.core_type = #tpu.core_type<tc>, window_params = [{transform_indices = @transform_0, window_bounds = array<i64: 3, 128>}, {pipeline_mode = #tpu.pipeline_mode<synchronous>, transform_indices = @transform_1, window_bounds = array<i64: 16, 3>}, {pipeline_mode = #tpu.pipeline_mode<synchronous>, transform_indices = @transform_2, window_bounds = array<i64: 16, 1>}, {pipeline_mode = #tpu.pipeline_mode<synchronous>, transform_indices = @transform_3, window_bounds = array<i64: 8, 16>}, {pipeline_mode = #tpu.pipeline_mode<synchronous>, transform_indices = @transform_4, window_bounds = array<i64: 8, 1>}, {pipeline_mode = #tpu.pipeline_mode<synchronous>, transform_indices = @transform_5, window_bounds = array<i64: 8, 1>}, {pipeline_mode = #tpu.pipeline_mode<synchronous>, transform_indices = @transform_6, window_bounds = array<i64: 1, 1>}, {transform_indices = @transform_7, window_bounds = array<i64: 1, 128>}]} {
    %c0 = arith.constant 0 : index
    %c0_0 = arith.constant 0 : index
    %0 = vector.load %arg1[%c0, %c0_0] : memref<3x128xf32, #tpu.memory_space<vmem>>, vector<3x128xf32>
    %c0_1 = arith.constant 0 : index
    %c0_2 = arith.constant 0 : index
    %1 = vector.load %arg2[%c0_1, %c0_2] : memref<16x3xf32, #tpu.memory_space<vmem>>, vector<16x3xf32>
    %cst = arith.constant dense<0.000000e+00> : vector<16x128xf32>
    %2 = tpu.matmul %1, %0, %cst {dimension_numbers = #tpu.dot_dimension_numbers<[1], [0], [0], [1], [0, 0, 1, 1], [], []>} : vector<16x3xf32>, vector<3x128xf32>, vector<16x128xf32> -> vector<16x128xf32>
    %c0_3 = arith.constant 0 : index
    %c0_4 = arith.constant 0 : index
    %3 = vector.load %arg3[%c0_3, %c0_4] : memref<16x1xf32, #tpu.memory_space<vmem>>, vector<16x1xf32>
    %4 = vector.broadcast %3 : vector<16x1xf32> to vector<16x128xf32>
    %5 = arith.addf %2, %4 : vector<16x128xf32>
    %cst_5 = arith.constant 0.000000e+00 : f32
    %6 = vector.broadcast %cst_5 : f32 to vector<16x128xf32>
    %7 = arith.maximumf %5, %6 : vector<16x128xf32>
    %c0_6 = arith.constant 0 : index
    %c0_7 = arith.constant 0 : index
    %8 = vector.load %arg4[%c0_6, %c0_7] : memref<8x16xf32, #tpu.memory_space<vmem>>, vector<8x16xf32>
    %cst_8 = arith.constant dense<0.000000e+00> : vector<8x128xf32>
    %9 = tpu.matmul %8, %7, %cst_8 {dimension_numbers = #tpu.dot_dimension_numbers<[1], [0], [0], [1], [0, 0, 1, 1], [], []>} : vector<8x16xf32>, vector<16x128xf32>, vector<8x128xf32> -> vector<8x128xf32>
    %c0_9 = arith.constant 0 : index
    %c0_10 = arith.constant 0 : index
    %10 = vector.load %arg5[%c0_9, %c0_10] : memref<8x1xf32, #tpu.memory_space<vmem>>, vector<8x1xf32>
    %11 = vector.broadcast %10 : vector<8x1xf32> to vector<8x128xf32>
    %12 = arith.addf %9, %11 : vector<8x128xf32>
    %cst_11 = arith.constant 0.000000e+00 : f32
    %13 = vector.broadcast %cst_11 : f32 to vector<8x128xf32>
    %14 = arith.maximumf %12, %13 : vector<8x128xf32>
    %c0_12 = arith.constant 0 : index
    %c0_13 = arith.constant 0 : index
    %15 = vector.load %arg6[%c0_12, %c0_13] : memref<8x1xf32, #tpu.memory_space<vmem>>, vector<8x1xf32>
    %16 = vector.broadcast %15 : vector<8x1xf32> to vector<8x128xf32>
    %17 = arith.mulf %16, %14 : vector<8x128xf32>
    %cst_14 = arith.constant dense<0.000000e+00> : vector<128xf32>
    %18 = vector.multi_reduction <add>, %17, %cst_14 [0] : vector<8x128xf32> to vector<128xf32>
    %19 = vector.shape_cast %18 : vector<128xf32> to vector<1x128xf32>
    %c0_15 = arith.constant 0 : index
    %c0_16 = arith.constant 0 : index
    %20 = vector.load %arg7[%c0_15, %c0_16] : memref<1x1xf32, #tpu.memory_space<vmem>>, vector<1x1xf32>
    %21 = vector.broadcast %20 : vector<1x1xf32> to vector<1x128xf32>
    %22 = arith.addf %19, %21 : vector<1x128xf32>
    %c0_17 = arith.constant 0 : index
    %c0_18 = arith.constant 0 : index
    %23 = vector.load %arg8[%c0_17, %c0_18] : memref<1x128xf32, #tpu.memory_space<vmem>>, vector<1x128xf32>
    tpu.vector_store %arg8[%c0_17, %c0_18], %22 {strides = array<i32>} : memref<1x128xf32, #tpu.memory_space<vmem>>, vector<1x128xf32>,
    return
  }
  func.func @transform_0(%arg0: i32) -> (i32, i32) {
    %c0_i32 = arith.constant 0 : i32
    %c0_i32_0 = arith.constant 0 : i32
    return %c0_i32, %arg0 : i32, i32
  }
  func.func @transform_1(%arg0: i32) -> (i32, i32) {
    %c0_i32 = arith.constant 0 : i32
    %c0_i32_0 = arith.constant 0 : i32
    %c0_i32_1 = arith.constant 0 : i32
    return %c0_i32, %c0_i32_0 : i32, i32
  }
  func.func @transform_2(%arg0: i32) -> (i32, i32) {
    %c0_i32 = arith.constant 0 : i32
    %c0_i32_0 = arith.constant 0 : i32
    %c0_i32_1 = arith.constant 0 : i32
    return %c0_i32, %c0_i32_0 : i32, i32
  }
  func.func @transform_3(%arg0: i32) -> (i32, i32) {
    %c0_i32 = arith.constant 0 : i32
    %c0_i32_0 = arith.constant 0 : i32
    %c0_i32_1 = arith.constant 0 : i32
    return %c0_i32, %c0_i32_0 : i32, i32
  }
  func.func @transform_4(%arg0: i32) -> (i32, i32) {
    %c0_i32 = arith.constant 0 : i32
    %c0_i32_0 = arith.constant 0 : i32
    %c0_i32_1 = arith.constant 0 : i32
    return %c0_i32, %c0_i32_0 : i32, i32
  }
  func.func @transform_5(%arg0: i32) -> (i32, i32) {
    %c0_i32 = arith.constant 0 : i32
    %c0_i32_0 = arith.constant 0 : i32
    %c0_i32_1 = arith.constant 0 : i32
    return %c0_i32, %c0_i32_0 : i32, i32
  }
  func.func @transform_6(%arg0: i32) -> (i32, i32) {
    %c0_i32 = arith.constant 0 : i32
    %c0_i32_0 = arith.constant 0 : i32
    %c0_i32_1 = arith.constant 0 : i32
    return %c0_i32, %c0_i32_0 : i32, i32
  }
  func.func @transform_7(%arg0: i32) -> (i32, i32) {
    %c0_i32 = arith.constant 0 : i32
    %c0_i32_0 = arith.constant 0 : i32
    return %c0_i32, %arg0 : i32, i32
  }
}

</mosaic_0001>

<llo_original>
// kernel: lightnet_forward.1
$region0: #{lightnet_forward.1}
  #allocation0 [shape = 'u32[]', space=smem, size = 0x4, offset = 0x4, fixed_abs, tag = 'smem constant byte address 0x4 - core index']
  #allocation1 [shape = 'u32[72,128]{1,0:T(1,128)}', space=vmem, size = 0x9000, scoped, tag = 'internal scratch']
  #allocation2 [shape = 'f32[1,1]{1,0:T(1,128)S(1)}', space=vmem, size = 0x200, scoped, tag = 'scoped memory for lightnet_forward.1']
  %s0 = inlined_call_operand.vmem [shape: f32[3,128], index: 0, kind: input, shape index: {}]
  %s1 = inlined_call_operand.vmem [shape: f32[16,3], index: 1, kind: input, shape index: {}]
  %s2 = inlined_call_operand.vmem [shape: f32[16,1], index: 2, kind: input, shape index: {}]
  %s3 = inlined_call_operand.vmem [shape: f32[8,16], index: 3, kind: input, shape index: {}]
  %s4 = inlined_call_operand.vmem [shape: f32[8,1], index: 4, kind: input, shape index: {}]
  %s5 = inlined_call_operand.vmem [shape: f32[8,1], index: 5, kind: input, shape index: {}]
  %s6 = inlined_call_operand.<no memory space> [shape: f32[1,1], index: 6, kind: input, shape index: {}]
  %s7 = inlined_call_operand.vmem [shape: f32[1,128], index: 7, kind: output, shape index: {}]
  %s8 = sld [smem:[#allocation0]]
  $region38: #{lightnet_forward.1} parent=0
    _
  %s10 = ssub.s32 1, %s8
  %s11 = scalar_select 0, %s10, %s8
  %v12 = vstv %s6
  %13 = vst [vmem:[#allocation2] sm:$0x1] %v12
  // Predicated region
  $region2: #{lightnet_forward.1} parent=0 // pred_check
    _
  $region3: #{lightnet_forward.1} parent=0 // pred_check_branch
    %15 = sbr.rel (0) target = $region5
  $region4: #{lightnet_forward.1} parent=0 // pred_region
    _
  $region5: #{lightnet_forward.1} parent=0 // pred_fallthru
    _
  // Predicated region
  $region6: #{lightnet_forward.1} parent=0 // pred_check
    _
  $region7: #{lightnet_forward.1} parent=0 // pred_check_branch
    %17 = sbr.rel (0) target = $region9
  $region8: #{lightnet_forward.1} parent=0 // pred_region
    _
  $region9: #{lightnet_forward.1} parent=0 // pred_fallthru
    _
  // Predicated region
  $region10: #{lightnet_forward.1} parent=0 // pred_check
    _
  $region11: #{lightnet_forward.1} parent=0 // pred_check_branch
    %19 = sbr.rel (0) target = $region13
  $region12: #{lightnet_forward.1} parent=0 // pred_region
    _
  $region13: #{lightnet_forward.1} parent=0 // pred_fallthru
    _
  // Predicated region
  $region14: #{lightnet_forward.1} parent=0 // pred_check
    _
  $region15: #{lightnet_forward.1} parent=0 // pred_check_branch
    %21 = sbr.rel (0) target = $region17
  $region16: #{lightnet_forward.1} parent=0 // pred_region
    _
  $region17: #{lightnet_forward.1} parent=0 // pred_fallthru
    _
  // Predicated region
  $region18: #{lightnet_forward.1} parent=0 // pred_check
    _
  $region19: #{lightnet_forward.1} parent=0 // pred_check_branch
    %23 = sbr.rel (0) target = $region21
  $region20: #{lightnet_forward.1} parent=0 // pred_region
    _
  $region21: #{lightnet_forward.1} parent=0 // pred_fallthru
    _
  // Predicated region
  $region22: #{lightnet_forward.1} parent=0 // pred_check
    _
  $region23: #{lightnet_forward.1} parent=0 // pred_check_branch
    %25 = sbr.rel (0) target = $region25
  $region24: #{lightnet_forward.1} parent=0 // pred_region
    _
  $region25: #{lightnet_forward.1} parent=0 // pred_fallthru
    _
  // Predicated region
  $region26: #{lightnet_forward.1} parent=0 // pred_check
    _
  $region27: #{lightnet_forward.1} parent=0 // pred_check_branch
    %27 = sbr.rel (0) target = $region29
  $region28: #{lightnet_forward.1} parent=0 // pred_region
    _
  $region29: #{lightnet_forward.1} parent=0 // pred_fallthru
    _
  %v28 = vld [vmem:[%s0] sm:$0x7]
  %v29 = vld [vmem:[%s1] sm:$0xff]
  %v30 = vld [vmem:[%s1 + $0x8] sm:$0xff]
  %v31 = vld [vmem:[%s2] sm:$0xff]
  %v32 = vld [vmem:[%s2 + $0x8] sm:$0xff]
  %34 = vset.pattern.permute.xlu0 0
  %35 = vperm.xlu0 %34, %v31
  %v36 = vpop.permute.xlu0 %35
  %39 = vset.pattern.permute.xlu0 0
  %40 = vperm.xlu0 %39, %v32
  %v41 = vpop.permute.xlu0 %40
  %vm43 = vcmask 23552
  %v45 = vsel %vm43, %v29, 0
  %v48 = vsel %vm43, %v30, 0
  %vm50 = vcmask 1042432
  %v52 = vsel %vm50, %v28, 0
  %54 = vmatpush.msra.mxu0 0.0
  %55 = vmatpush.msra.mxu0 0.0
  %56 = vmatpush.msra.mxu0 0.0
  %57 = vmatpush.msra.mxu0 0.0
  %58 = vmatpush.msra.mxu0 0.0
  %59 = vmatpush.msra.mxu0 0.0
  %60 = vmatpush.msra.mxu0 0.0
  %61 = vmatpush.msra.mxu0 0.0
  %62 = vmatpush.msra.mxu0 0.0
  %63 = vmatpush.msra.mxu0 0.0
  %64 = vmatpush.msra.mxu0 0.0
  %65 = vmatpush.msra.mxu0 0.0
  %66 = vmatpush.msra.mxu0 0.0
  %67 = vmatpush.msra.mxu0 0.0
  %68 = vmatpush.msra.mxu0 0.0
  %69 = vmatpush.msra.mxu0 %v52
  %70 = vmatmul.f32.gmra.mxu0 %v45
  %v71 = vpop.f32.mrf.mxu0
  %v72 = vadd.f32 %v36, %v71
  %73 = vmatmul.f32.gmra.mxu0 %v48
  %v74 = vpop.f32.mrf.mxu0
  %v75 = vadd.f32 %v41, %v74
  %76 = vdwg.mxu0
  %v77 = vmax.f32 %v72, 0.0
  %v78 = vmax.f32 %v75, 0.0
  %v79 = vld [vmem:[%s3] sm:$0xff]
  %v80 = vld [vmem:[%s4] sm:$0xff]
  %82 = vset.pattern.permute.xlu0 0
  %83 = vperm.xlu0 %82, %v80
  %v84 = vpop.permute.xlu0 %83
  %vm86 = vcmask 130048
  %v88 = vsel %vm86, %v79, 0
  %90 = vmatpush.msra.mxu0 0.0
  %91 = vmatpush.msra.mxu0 0.0
  %92 = vmatpush.msra.mxu0 0.0
  %93 = vmatpush.msra.mxu0 0.0
  %94 = vmatpush.msra.mxu0 0.0
  %95 = vmatpush.msra.mxu0 0.0
  %96 = vmatpush.msra.mxu0 0.0
  %97 = vmatpush.msra.mxu0 0.0
  %98 = vmatpush.msra.mxu0 0.0
  %99 = vmatpush.msra.mxu0 0.0
  %100 = vmatpush.msra.mxu0 0.0
  %101 = vmatpush.msra.mxu0 0.0
  %102 = vmatpush.msra.mxu0 0.0
  %103 = vmatpush.msra.mxu0 0.0
  %104 = vmatpush.msra.mxu0 %v78
  %105 = vmatpush.msra.mxu0 %v77
  %106 = vmatmul.f32.gmra.mxu0 %v88
  %v107 = vpop.f32.mrf.mxu0
  %v108 = vadd.f32 %v84, %v107
  %109 = vdwg.mxu0
  %v110 = vmax.f32 %v108, 0.0
  %v111 = vld [vmem:[%s5] sm:$0xff]
  %113 = vset.pattern.permute.xlu0 0
  %114 = vperm.xlu0 %113, %v111
  %v115 = vpop.permute.xlu0 %114
  %v117 = vmul.f32 %v115, %v110
  %v118 = vrot.slane %v117, 4
  %v119 = vadd.f32 %v117, %v118
  %v120 = vrot.slane %v119, 2
  %v121 = vadd.f32 %v119, %v120
  %v122 = vrot.slane %v121, 1
  %v123 = vadd.f32 %v121, %v122
  %v124 = vld [vmem:[#allocation2] sm:$0x1]
  %126 = vset.pattern.permute.xlu0 0
  %127 = vperm.xlu0 %126, %v124
  %v128 = vpop.permute.xlu0 %127
  %v130 = vperm.slane %v128, 0
  %v131 = vadd.f32 %v123, %v130
  %132 = vst [vmem:[%s7] sm:$0x1] %v131
  // Predicated region
  $region30: #{lightnet_forward.1} parent=0 // pred_check
    _
  $region31: #{lightnet_forward.1} parent=0 // pred_check_branch
    %134 = sbr.rel (0) target = $region33
  $region32: #{lightnet_forward.1} parent=0 // pred_region
    _
  $region33: #{lightnet_forward.1} parent=0 // pred_fallthru
    _
  // Predicated region
  $region34: #{lightnet_forward.1} parent=0 // pred_check
    _
  $region35: #{lightnet_forward.1} parent=0 // pred_check_branch
    %136 = sbr.rel (0) target = $region37
  $region36: #{lightnet_forward.1} parent=0 // pred_region
    _
  $region37: #{lightnet_forward.1} parent=0 // pred_fallthru
    _

</llo_original>
